<compile_context>
chip_gen: v5e
topology: v5e:2x2
jax: 0.10.0
libtpu: 0.0.40
codegen_flags: <defaults>
</compile_context>

<pallas_src>
import functools

import jax
import jax.numpy as jnp
from jax.experimental import pallas as pl
from jax.experimental.pallas import tpu as pltpu


def _round_up(x, m):
    return ((x + m - 1) // m) * m


def _mlp_kernel(x_ref,
                w1_ref, w2_ref, w3_ref, w4_ref, w5_ref, w6_ref,
                b1_ref, b2_ref, b3_ref, b4_ref, b5_ref, b6_ref,
                out_ref,
                *, sparse_tol, matmul_dtype):
    def lin(h, w_ref, b_ref):
        # MXU matmul with f32 accumulation; bias add in f32.
        return jnp.dot(h, w_ref[...], preferred_element_type=jnp.float32) + b_ref[...]

    h = x_ref[...]                                      # (TB, nn_), matmul dtype
    for w_ref, b_ref in ((w1_ref, b1_ref), (w2_ref, b2_ref), (w3_ref, b3_ref),
                         (w4_ref, b4_ref), (w5_ref, b5_ref)):
        # f32 bias+ReLU (works on v5e too; v6e/v7x could do this in bf16 if VALU-bound).
        h = jnp.maximum(lin(h, w_ref, b_ref), 0.0).astype(matmul_dtype)

    full = lin(h, w6_ref, b6_ref)                       # (TB, nn_), f32
    out_ref[...] = jnp.where(jnp.abs(full) < sparse_tol,
                             jnp.zeros_like(full), full)


@functools.partial(jax.jit, static_argnames=("n", "sparse_tol", "diagonal_bias",
                                             "block_b", "matmul_dtype"))
def nonsymmetric_id_fcn(x, params, *, n, sparse_tol=1e-5, diagonal_bias=None,
                        block_b=512, matmul_dtype=jnp.float32):
    """x: (B, n*n) float32. params: dict w1..w6 (in,out), b1..b6 (1,out) in float32."""
    B, feat = x.shape
    nn_ = n * n
    assert feat == nn_, f"expected flat input of width n*n={nn_}, got {feat}"
    hidden = params["w1"].shape[1]

    LANE = 128
    hid_pad = _round_up(hidden, LANE)
    f32 = jnp.float32
    is_f32 = jnp.dtype(matmul_dtype) == jnp.dtype(jnp.float32)
    itemsize = jnp.dtype(matmul_dtype).itemsize

    # ---------------- VMEM budgeting ----------------
    w_bytes = (nn_ * hid_pad + 4 * hid_pad * hid_pad + hid_pad * nn_) * itemsize
    b_bytes = (5 * hid_pad + nn_) * 4
    # Constant-index-map (invariant) blocks are DMA'd once but still get 2 buffers.
    weight_resident = 2 * (w_bytes + b_bytes)

    # ---------------- Batch tile selection ----------------
    align = 8 if is_f32 else 16                        # sublane packing per dtype
    act_budget = max(4 << 20, (40 << 20) - weight_resident)   # conservative: v7x 64 MiB/TC
    bytes_per_row = 2 * nn_ * (itemsize + 4) + 2 * hid_pad * 4
    tb_vmem = max(align, (act_budget // bytes_per_row) // align * align)

    tb_full = _round_up(B, align)
    tb = min(_round_up(block_b, align), tb_full, tb_vmem)
    if tb >= tb_full and tb_full >= 2 * align:
        # Guarantee >= 2 grid steps so the "parallel" batch axis can actually
        # shard across v7x's two TensorCores (negligible cost elsewhere).
        tb = min(tb, _round_up(pl.cdiv(B, 2), align))
    tb = max(tb, align)
    b_pad = _round_up(B, tb)
    grid = (b_pad // tb,)

    # ---------------- Parameter packing (host-side, tiny, one-time) ----------------
    def pad2(a, rows, cols):
        pr, pc = rows - a.shape[0], cols - a.shape[1]
        return a if (pr == 0 and pc == 0) else jnp.pad(a, ((0, pr), (0, pc)))

    # Fold diagonal bias into b6 (row-major flat index k is on the diagonal iff
    # k % (n + 1) == 0).
    b6 = params["b6"].astype(f32)
    if diagonal_bias is not None:
        k = jnp.arange(nn_)
        diag = ((k % (n + 1)) == 0).astype(f32)[None, :]
        b6 = b6 + jnp.float32(diagonal_bias) * diag

    dims = [(nn_, hid_pad), (hid_pad, hid_pad), (hid_pad, hid_pad),
            (hid_pad, hid_pad), (hid_pad, hid_pad), (hid_pad, nn_)]
    ws, bs = [], []
    for i, (din, dout) in enumerate(dims):
        w = params[f"w{i + 1}"].astype(f32)
        b = b6 if i == 5 else params[f"b{i + 1}"].astype(f32)
        ws.append(pad2(w, din, dout).astype(matmul_dtype))   # matmul dtype (f32 or bf16)
        bs.append(pad2(b, 1, dout))                          # biases stay f32
    # TODO(synk): v7x-only fp8 weight path for w2..w5 (another ~2x MXU / VMEM) not emitted.

    # x streams unpadded in the feature dim (block last dim == full array dim);
    # pad the batch dim only when B is not a tile multiple.
    x_p = x.astype(matmul_dtype)
    if b_pad != B:
        x_p = jnp.pad(x_p, ((0, b_pad - B), (0, 0)))

    kernel = functools.partial(_mlp_kernel, sparse_tol=sparse_tol,
                               matmul_dtype=matmul_dtype)

    # Weights/biases: whole-array blocks, constant index map -> VMEM-resident across steps.
    wspec = lambda a: pl.BlockSpec(a.shape, lambda b: (0, 0))

    flops = 2 * b_pad * (nn_ * hid_pad + 4 * hid_pad * hid_pad + hid_pad * nn_)
    bytes_accessed = (b_pad * nn_ * itemsize + w_bytes + b_bytes + b_pad * nn_ * 4)
    cost = pl.CostEstimate(flops=flops, transcendentals=0,
                           bytes_accessed=bytes_accessed)

    io_resident = 2 * tb * nn_ * (itemsize + 4)      # double-buffered x / out tiles
    act_resident = 4 * tb * hid_pad * 4              # f32 intermediates / cast copies
    needed = weight_resident + io_resident + act_resident
    vmem_limit = int(min(max(needed * 3 // 2 + (4 << 20), 32 << 20), 128 << 20))

    out_p = pl.pallas_call(
        kernel,
        out_shape=jax.ShapeDtypeStruct((b_pad, nn_), jnp.float32),
        grid=grid,
        in_specs=[pl.BlockSpec((tb, nn_), lambda b: (b, 0))]
                 + [wspec(a) for a in ws]
                 + [wspec(a) for a in bs],
        out_specs=pl.BlockSpec((tb, nn_), lambda b: (b, 0)),
        compiler_params=pltpu.CompilerParams(
            dimension_semantics=("parallel",),
            vmem_limit_bytes=vmem_limit),
        cost_estimate=cost,
    )(x_p, *ws, *bs)

    # Drop padded batch rows (if any); the reshape to (B, n, n) is free (contiguous).
    out = out_p if b_pad == B else out_p[:B]
    return out.reshape(B, n, n)


def init_params(key, n, hidden):
    """Deterministic synthetic parameters (shapes match the nn.Linear layers)."""
    nn_ = n * n
    dims = [(nn_, hidden), (hidden, hidden), (hidden, hidden),
            (hidden, hidden), (hidden, hidden), (hidden, nn_)]
    params = {}
    keys = jax.random.split(key, 2 * len(dims))
    for i, (din, dout) in enumerate(dims):
        scale = 1.0 / jnp.sqrt(jnp.float32(din))
        params[f"w{i + 1}"] = (jax.random.uniform(keys[2 * i], (din, dout),
                                                  jnp.float32, -1.0, 1.0) * scale)
        params[f"b{i + 1}"] = (jax.random.uniform(keys[2 * i + 1], (1, dout),
                                                  jnp.float32, -1.0, 1.0) * scale)
    return params


def reference(x, params, *, n, sparse_tol, diagonal_bias):
    """Plain-JAX reference (float32) for sanity checking."""
    h = x
    for i in range(1, 6):
        h = jnp.maximum(h @ params[f"w{i}"] + params[f"b{i}"], 0.0)
    full = (h @ params["w6"] + params["b6"]).reshape(x.shape[0], n, n)
    if diagonal_bias is not None:
        full = full + diagonal_bias * jnp.eye(n, dtype=full.dtype)
    return jnp.where(jnp.abs(full) < sparse_tol, jnp.zeros_like(full), full)


if __name__ == "__main__":
    n = 8            # matrices are n x n  -> flat feature dim n*n = 64
    hidden = 32
    batch_size = 64
    sparse_tol = 1e-5
    diagonal_bias = 0.5

    key = jax.random.PRNGKey(0)
    k_x, k_p = jax.random.split(key)
    x = jax.random.normal(k_x, (batch_size, n * n), dtype=jnp.float32)
    params = init_params(k_p, n, hidden)

    ref = reference(x, params, n=n, sparse_tol=sparse_tol,
                    diagonal_bias=diagonal_bias)

    # float32 path: strict correctness (matches module semantics exactly).
    out = nonsymmetric_id_fcn(x, params, n=n, sparse_tol=sparse_tol,
                              diagonal_bias=diagonal_bias)
    out = jax.block_until_ready(out)
    assert out.shape == (batch_size, n, n)
    assert jnp.allclose(out, ref, atol=5e-5, rtol=1e-5)

    # bf16 matmul inputs (f32 accumulation + f32 epilogue): recommended on v6e/v7x;
    # looser tolerance (sparsity pattern near tol may differ from f32 by rounding).
    out_bf16 = nonsymmetric_id_fcn(x, params, n=n, sparse_tol=sparse_tol,
                                   diagonal_bias=diagonal_bias,
                                   matmul_dtype=jnp.bfloat16)
    out_bf16 = jax.block_until_ready(out_bf16)
    assert out_bf16.shape == (batch_size, n, n)
    assert jnp.allclose(out_bf16, ref, atol=1e-1, rtol=1e-1)

    print("KERNEL_OK")
</pallas_src>

<mosaic_0001>
module attributes {stable_mosaic.version = 11 : i64} {
  func.func @_mlp_kernel(%arg0: i32, %arg1: memref<32x64xf32, #tpu.memory_space<vmem>>, %arg2: memref<64x128xf32, #tpu.memory_space<vmem>>, %arg3: memref<128x128xf32, #tpu.memory_space<vmem>>, %arg4: memref<128x128xf32, #tpu.memory_space<vmem>>, %arg5: memref<128x128xf32, #tpu.memory_space<vmem>>, %arg6: memref<128x128xf32, #tpu.memory_space<vmem>>, %arg7: memref<128x64xf32, #tpu.memory_space<vmem>>, %arg8: memref<1x128xf32, #tpu.memory_space<vmem>>, %arg9: memref<1x128xf32, #tpu.memory_space<vmem>>, %arg10: memref<1x128xf32, #tpu.memory_space<vmem>>, %arg11: memref<1x128xf32, #tpu.memory_space<vmem>>, %arg12: memref<1x128xf32, #tpu.memory_space<vmem>>, %arg13: memref<1x64xf32, #tpu.memory_space<vmem>>, %arg14: memref<32x64xf32, #tpu.memory_space<vmem>>) attributes {dimension_semantics = [#tpu.dimension_semantics<parallel>], iteration_bounds = array<i64: 2>, scalar_prefetch = 0 : i64, scratch_operands = 0 : i64, tpu.core_type = #tpu.core_type<tc>, window_params = [{transform_indices = @transform_0, window_bounds = array<i64: 32, 64>}, {pipeline_mode = #tpu.pipeline_mode<synchronous>, transform_indices = @transform_1, window_bounds = array<i64: 64, 128>}, {pipeline_mode = #tpu.pipeline_mode<synchronous>, transform_indices = @transform_2, window_bounds = array<i64: 128, 128>}, {pipeline_mode = #tpu.pipeline_mode<synchronous>, transform_indices = @transform_3, window_bounds = array<i64: 128, 128>}, {pipeline_mode = #tpu.pipeline_mode<synchronous>, transform_indices = @transform_4, window_bounds = array<i64: 128, 128>}, {pipeline_mode = #tpu.pipeline_mode<synchronous>, transform_indices = @transform_5, window_bounds = array<i64: 128, 128>}, {pipeline_mode = #tpu.pipeline_mode<synchronous>, transform_indices = @transform_6, window_bounds = array<i64: 128, 64>}, {pipeline_mode = #tpu.pipeline_mode<synchronous>, transform_indices = @transform_7, window_bounds = array<i64: 1, 128>}, {pipeline_mode = #tpu.pipeline_mode<synchronous>, transform_indices = @transform_8, window_bounds = array<i64: 1, 128>}, {pipeline_mode = #tpu.pipeline_mode<synchronous>, transform_indices = @transform_9, window_bounds = array<i64: 1, 128>}, {pipeline_mode = #tpu.pipeline_mode<synchronous>, transform_indices = @transform_10, window_bounds = array<i64: 1, 128>}, {pipeline_mode = #tpu.pipeline_mode<synchronous>, transform_indices = @transform_11, window_bounds = array<i64: 1, 128>}, {pipeline_mode = #tpu.pipeline_mode<synchronous>, transform_indices = @transform_12, window_bounds = array<i64: 1, 64>}, {transform_indices = @transform_13, window_bounds = array<i64: 32, 64>}]} {
    %c0 = arith.constant 0 : index
    %c0_0 = arith.constant 0 : index
    %0 = vector.load %arg1[%c0, %c0_0] : memref<32x64xf32, #tpu.memory_space<vmem>>, vector<32x64xf32>
    %c0_1 = arith.constant 0 : index
    %c0_2 = arith.constant 0 : index
    %1 = vector.load %arg2[%c0_1, %c0_2] : memref<64x128xf32, #tpu.memory_space<vmem>>, vector<64x128xf32>
    %cst = arith.constant dense<0.000000e+00> : vector<32x128xf32>
    %2 = tpu.matmul %0, %1, %cst {dimension_numbers = #tpu.dot_dimension_numbers<[1], [0], [0], [1], [0, 0, 1, 1], [], []>} : vector<32x64xf32>, vector<64x128xf32>, vector<32x128xf32> -> vector<32x128xf32>
    %c0_3 = arith.constant 0 : index
    %c0_4 = arith.constant 0 : index
    %3 = vector.load %arg8[%c0_3, %c0_4] : memref<1x128xf32, #tpu.memory_space<vmem>>, vector<1x128xf32>
    %4 = vector.broadcast %3 : vector<1x128xf32> to vector<32x128xf32>
    %5 = arith.addf %2, %4 : vector<32x128xf32>
    %cst_5 = arith.constant 0.000000e+00 : f32
    %6 = vector.broadcast %cst_5 : f32 to vector<32x128xf32>
    %7 = arith.maximumf %5, %6 : vector<32x128xf32>
    %c0_6 = arith.constant 0 : index
    %c0_7 = arith.constant 0 : index
    %8 = vector.load %arg3[%c0_6, %c0_7] : memref<128x128xf32, #tpu.memory_space<vmem>>, vector<128x128xf32>
    %cst_8 = arith.constant dense<0.000000e+00> : vector<32x128xf32>
    %9 = tpu.matmul %7, %8, %cst_8 {dimension_numbers = #tpu.dot_dimension_numbers<[1], [0], [0], [1], [0, 0, 1, 1], [], []>} : vector<32x128xf32>, vector<128x128xf32>, vector<32x128xf32> -> vector<32x128xf32>
    %c0_9 = arith.constant 0 : index
    %c0_10 = arith.constant 0 : index
    %10 = vector.load %arg9[%c0_9, %c0_10] : memref<1x128xf32, #tpu.memory_space<vmem>>, vector<1x128xf32>
    %11 = vector.broadcast %10 : vector<1x128xf32> to vector<32x128xf32>
    %12 = arith.addf %9, %11 : vector<32x128xf32>
    %cst_11 = arith.constant 0.000000e+00 : f32
    %13 = vector.broadcast %cst_11 : f32 to vector<32x128xf32>
    %14 = arith.maximumf %12, %13 : vector<32x128xf32>
    %c0_12 = arith.constant 0 : index
    %c0_13 = arith.constant 0 : index
    %15 = vector.load %arg4[%c0_12, %c0_13] : memref<128x128xf32, #tpu.memory_space<vmem>>, vector<128x128xf32>
    %cst_14 = arith.constant dense<0.000000e+00> : vector<32x128xf32>
    %16 = tpu.matmul %14, %15, %cst_14 {dimension_numbers = #tpu.dot_dimension_numbers<[1], [0], [0], [1], [0, 0, 1, 1], [], []>} : vector<32x128xf32>, vector<128x128xf32>, vector<32x128xf32> -> vector<32x128xf32>
    %c0_15 = arith.constant 0 : index
    %c0_16 = arith.constant 0 : index
    %17 = vector.load %arg10[%c0_15, %c0_16] : memref<1x128xf32, #tpu.memory_space<vmem>>, vector<1x128xf32>
    %18 = vector.broadcast %17 : vector<1x128xf32> to vector<32x128xf32>
    %19 = arith.addf %16, %18 : vector<32x128xf32>
    %cst_17 = arith.constant 0.000000e+00 : f32
    %20 = vector.broadcast %cst_17 : f32 to vector<32x128xf32>
    %21 = arith.maximumf %19, %20 : vector<32x128xf32>
    %c0_18 = arith.constant 0 : index
    %c0_19 = arith.constant 0 : index
    %22 = vector.load %arg5[%c0_18, %c0_19] : memref<128x128xf32, #tpu.memory_space<vmem>>, vector<128x128xf32>
    %cst_20 = arith.constant dense<0.000000e+00> : vector<32x128xf32>
    %23 = tpu.matmul %21, %22, %cst_20 {dimension_numbers = #tpu.dot_dimension_numbers<[1], [0], [0], [1], [0, 0, 1, 1], [], []>} : vector<32x128xf32>, vector<128x128xf32>, vector<32x128xf32> -> vector<32x128xf32>
    %c0_21 = arith.constant 0 : index
    %c0_22 = arith.constant 0 : index
    %24 = vector.load %arg11[%c0_21, %c0_22] : memref<1x128xf32, #tpu.memory_space<vmem>>, vector<1x128xf32>
    %25 = vector.broadcast %24 : vector<1x128xf32> to vector<32x128xf32>
    %26 = arith.addf %23, %25 : vector<32x128xf32>
    %cst_23 = arith.constant 0.000000e+00 : f32
    %27 = vector.broadcast %cst_23 : f32 to vector<32x128xf32>
    %28 = arith.maximumf %26, %27 : vector<32x128xf32>
    %c0_24 = arith.constant 0 : index
    %c0_25 = arith.constant 0 : index
    %29 = vector.load %arg6[%c0_24, %c0_25] : memref<128x128xf32, #tpu.memory_space<vmem>>, vector<128x128xf32>
    %cst_26 = arith.constant dense<0.000000e+00> : vector<32x128xf32>
    %30 = tpu.matmul %28, %29, %cst_26 {dimension_numbers = #tpu.dot_dimension_numbers<[1], [0], [0], [1], [0, 0, 1, 1], [], []>} : vector<32x128xf32>, vector<128x128xf32>, vector<32x128xf32> -> vector<32x128xf32>
    %c0_27 = arith.constant 0 : index
    %c0_28 = arith.constant 0 : index
    %31 = vector.load %arg12[%c0_27, %c0_28] : memref<1x128xf32, #tpu.memory_space<vmem>>, vector<1x128xf32>
    %32 = vector.broadcast %31 : vector<1x128xf32> to vector<32x128xf32>
    %33 = arith.addf %30, %32 : vector<32x128xf32>
    %cst_29 = arith.constant 0.000000e+00 : f32
    %34 = vector.broadcast %cst_29 : f32 to vector<32x128xf32>
    %35 = arith.maximumf %33, %34 : vector<32x128xf32>
    %c0_30 = arith.constant 0 : index
    %c0_31 = arith.constant 0 : index
    %36 = vector.load %arg7[%c0_30, %c0_31] : memref<128x64xf32, #tpu.memory_space<vmem>>, vector<128x64xf32>
    %cst_32 = arith.constant dense<0.000000e+00> : vector<32x64xf32>
    %37 = tpu.matmul %35, %36, %cst_32 {dimension_numbers = #tpu.dot_dimension_numbers<[1], [0], [0], [1], [0, 0, 1, 1], [], []>} : vector<32x128xf32>, vector<128x64xf32>, vector<32x64xf32> -> vector<32x64xf32>
    %c0_33 = arith.constant 0 : index
    %c0_34 = arith.constant 0 : index
    %38 = vector.load %arg13[%c0_33, %c0_34] : memref<1x64xf32, #tpu.memory_space<vmem>>, vector<1x64xf32>
    %39 = vector.broadcast %38 : vector<1x64xf32> to vector<32x64xf32>
    %40 = arith.addf %37, %39 : vector<32x64xf32>
    %41 = math.absf %40 : vector<32x64xf32>
    %cst_35 = arith.constant 9.99999974E-6 : f32
    %42 = vector.broadcast %cst_35 : f32 to vector<32x64xf32>
    %43 = arith.cmpf olt, %41, %42 : vector<32x64xf32>
    %cst_36 = arith.constant 0.000000e+00 : f32
    %44 = vector.broadcast %cst_36 : f32 to vector<32x64xf32>
    %45 = arith.select %43, %44, %40 : vector<32x64xi1>, vector<32x64xf32>
    %c0_37 = arith.constant 0 : index
    %c0_38 = arith.constant 0 : index
    %46 = vector.load %arg14[%c0_37, %c0_38] : memref<32x64xf32, #tpu.memory_space<vmem>>, vector<32x64xf32>
    tpu.vector_store %arg14[%c0_37, %c0_38], %45 {strides = array<i32>} : memref<32x64xf32, #tpu.memory_space<vmem>>, vector<32x64xf32>,
    return
  }
  func.func @transform_0(%arg0: i32) -> (i32, i32) {
    %c0_i32 = arith.constant 0 : i32
    %c0_i32_0 = arith.constant 0 : i32
    return %arg0, %c0_i32 : i32, i32
  }
  func.func @transform_1(%arg0: i32) -> (i32, i32) {
    %c0_i32 = arith.constant 0 : i32
    %c0_i32_0 = arith.constant 0 : i32
    %c0_i32_1 = arith.constant 0 : i32
    return %c0_i32, %c0_i32_0 : i32, i32
  }
  func.func @transform_2(%arg0: i32) -> (i32, i32) {
    %c0_i32 = arith.constant 0 : i32
    %c0_i32_0 = arith.constant 0 : i32
    %c0_i32_1 = arith.constant 0 : i32
    return %c0_i32, %c0_i32_0 : i32, i32
  }
  func.func @transform_3(%arg0: i32) -> (i32, i32) {
    %c0_i32 = arith.constant 0 : i32
    %c0_i32_0 = arith.constant 0 : i32
    %c0_i32_1 = arith.constant 0 : i32
    return %c0_i32, %c0_i32_0 : i32, i32
  }
  func.func @transform_4(%arg0: i32) -> (i32, i32) {
    %c0_i32 = arith.constant 0 : i32
    %c0_i32_0 = arith.constant 0 : i32
    %c0_i32_1 = arith.constant 0 : i32
    return %c0_i32, %c0_i32_0 : i32, i32
  }
  func.func @transform_5(%arg0: i32) -> (i32, i32) {
    %c0_i32 = arith.constant 0 : i32
    %c0_i32_0 = arith.constant 0 : i32
    %c0_i32_1 = arith.constant 0 : i32
    return %c0_i32, %c0_i32_0 : i32, i32
  }
  func.func @transform_6(%arg0: i32) -> (i32, i32) {
    %c0_i32 = arith.constant 0 : i32
    %c0_i32_0 = arith.constant 0 : i32
    %c0_i32_1 = arith.constant 0 : i32
    return %c0_i32, %c0_i32_0 : i32, i32
  }
  func.func @transform_7(%arg0: i32) -> (i32, i32) {
    %c0_i32 = arith.constant 0 : i32
    %c0_i32_0 = arith.constant 0 : i32
    %c0_i32_1 = arith.constant 0 : i32
    return %c0_i32, %c0_i32_0 : i32, i32
  }
  func.func @transform_8(%arg0: i32) -> (i32, i32) {
    %c0_i32 = arith.constant 0 : i32
    %c0_i32_0 = arith.constant 0 : i32
    %c0_i32_1 = arith.constant 0 : i32
    return %c0_i32, %c0_i32_0 : i32, i32
  }
  func.func @transform_9(%arg0: i32) -> (i32, i32) {
    %c0_i32 = arith.constant 0 : i32
    %c0_i32_0 = arith.constant 0 : i32
    %c0_i32_1 = arith.constant 0 : i32
    return %c0_i32, %c0_i32_0 : i32, i32
  }
  func.func @transform_10(%arg0: i32) -> (i32, i32) {
    %c0_i32 = arith.constant 0 : i32
    %c0_i32_0 = arith.constant 0 : i32
    %c0_i32_1 = arith.constant 0 : i32
    return %c0_i32, %c0_i32_0 : i32, i32
  }
  func.func @transform_11(%arg0: i32) -> (i32, i32) {
    %c0_i32 = arith.constant 0 : i32
    %c0_i32_0 = arith.constant 0 : i32
    %c0_i32_1 = arith.constant 0 : i32
    return %c0_i32, %c0_i32_0 : i32, i32
  }
  func.func @transform_12(%arg0: i32) -> (i32, i32) {
    %c0_i32 = arith.constant 0 : i32
    %c0_i32_0 = arith.constant 0 : i32
    %c0_i32_1 = arith.constant 0 : i32
    return %c0_i32, %c0_i32_0 : i32, i32
  }
  func.func @transform_13(%arg0: i32) -> (i32, i32) {
    %c0_i32 = arith.constant 0 : i32
    %c0_i32_0 = arith.constant 0 : i32
    return %arg0, %c0_i32 : i32, i32
  }
}

</mosaic_0001>

<llo_original>
// kernel: nonsymmetric_id_fcn.1
$region0: #{nonsymmetric_id_fcn.1}
  #allocation0 [shape = 'u32[]', space=smem, size = 0x4, offset = 0x4, fixed_abs, tag = 'smem constant byte address 0x4 - core index']
  #allocation1 [shape = 'u32[72,128]{1,0:T(1,128)}', space=vmem, size = 0x9000, scoped, tag = 'internal scratch']
  %s0 = inlined_call_operand.vmem [shape: f32[64,64], index: 0, kind: input, shape index: {}]
  %s1 = inlined_call_operand.vmem [shape: f32[64,128], index: 1, kind: input, shape index: {}]
  %s2 = inlined_call_operand.vmem [shape: f32[128,128], index: 2, kind: input, shape index: {}]
  %s3 = inlined_call_operand.vmem [shape: f32[128,128], index: 3, kind: input, shape index: {}]
  %s4 = inlined_call_operand.vmem [shape: f32[128,128], index: 4, kind: input, shape index: {}]
  %s5 = inlined_call_operand.vmem [shape: f32[128,128], index: 5, kind: input, shape index: {}]
  %s6 = inlined_call_operand.vmem [shape: f32[128,64], index: 6, kind: input, shape index: {}]
  %s7 = inlined_call_operand.vmem [shape: f32[1,128], index: 7, kind: input, shape index: {}]
  %s8 = inlined_call_operand.vmem [shape: f32[1,128], index: 8, kind: input, shape index: {}]
  %s9 = inlined_call_operand.vmem [shape: f32[1,128], index: 9, kind: input, shape index: {}]
  %s10 = inlined_call_operand.vmem [shape: f32[1,128], index: 10, kind: input, shape index: {}]
  %s11 = inlined_call_operand.vmem [shape: f32[1,128], index: 11, kind: input, shape index: {}]
  %s12 = inlined_call_operand.vmem [shape: f32[1,64], index: 12, kind: input, shape index: {}]
  %s13 = inlined_call_operand.vmem [shape: f32[64,64], index: 13, kind: output, shape index: {}]
  %s14 = sld [smem:[#allocation0]]
  $region85: #{nonsymmetric_id_fcn.1} parent=0
    _
  %s16 = ssub.s32 1, %s14
  %s17 = scalar_select 0, %s16, %s14
  loop: start=0, step=1, limit=4
  $region2: #{nonsymmetric_id_fcn.1} parent=0 // loop_pre_header
    _
  $region3: #{nonsymmetric_id_fcn.1} parent=0 // loop_header
    %s19 = sphi 0, %s23
    %p20 = scmp.ge.s32.totalorder %s19, 4
    %s29 = sphi 0, %s31
    %s32 = sphi 0, %s29
    %s33 = sphi 0, %s32
    %s49 = sphi 0, %s33
    %s53 = sphi 0, %s53
    %s55 = sphi 0, %s53
    %s56 = sphi 0, %s55
    %s70 = sphi 0, %s56
    %s74 = sphi 0, %s74
    %s76 = sphi 0, %s74
    %s77 = sphi 0, %s76
    %s91 = sphi 0, %s77
    %s95 = sphi 0, %s95
    %s97 = sphi 0, %s95
    %s98 = sphi 0, %s97
    %s112 = sphi 0, %s98
    %s116 = sphi 0, %s116
    %s118 = sphi 0, %s116
    %s119 = sphi 0, %s118
    %s133 = sphi 0, %s119
    %s137 = sphi 0, %s137
    %s139 = sphi 0, %s137
    %s140 = sphi 0, %s139
    %s154 = sphi 0, %s140
    %s158 = sphi 0, %s158
    %s160 = sphi 0, %s158
    %s161 = sphi 0, %s160
    %s175 = sphi 0, %s161
    %s179 = sphi 0, %s179
    %s181 = sphi 0, %s179
    %s182 = sphi 0, %s181
    %s196 = sphi 0, %s182
    %s200 = sphi 0, %s200
    %s202 = sphi 0, %s200
    %s203 = sphi 0, %s202
    %s217 = sphi 0, %s203
    %s221 = sphi 0, %s221
    %s223 = sphi 0, %s221
    %s224 = sphi 0, %s223
    %s238 = sphi 0, %s224
    %s242 = sphi 0, %s242
    %s244 = sphi 0, %s242
    %s245 = sphi 0, %s244
    %s259 = sphi 0, %s245
    %s263 = sphi 0, %s263
    %s265 = sphi 0, %s263
    %s266 = sphi 0, %s265
    %s280 = sphi 0, %s266
    %s284 = sphi 0, %s284
    %s286 = sphi 0, %s284
    %s287 = sphi 0, %s286
    %s301 = sphi 0, %s287
    %s307 = sphi 0, %s309
    %s310 = sphi 0, %s307
    %s311 = sphi 0, %s310
    %s327 = sphi 0, %s311
  $region4: #{nonsymmetric_id_fcn.1} parent=0 // loop_header_branch
    %22 = sbr.rel (%p20) target = $region8
  $region5: #{nonsymmetric_id_fcn.1} parent=0 // loop_body
    %s24 = ssub.s32 %s19, 1
    %s25 = ssub.s32 %s19, 2
    %s26 = sadd.s32 %s19, 1
    %s27 = ssub.s32 %s19, %s26
    %p28 = scmp.eq.s32.totalorder %s27, 0
    %s30 = sadd.s32 %s29, 1
    %s31 = scalar_select %p28, %s29, %s30
    %p34 = pneg %p28
    %p35 = scmp.eq.s32.totalorder %s19, 1
    %p36 = por %p34, %p35
    %p37 = scmp.ne.s32.totalorder %s29, %s32
    %p38 = scmp.eq.s32.totalorder %s19, 0
    %p39 = por %p37, %p38
    %p40 = scmp.ne.s32.totalorder %s29, %s32
    %p41 = scmp.eq.s32.totalorder %s24, 1
    %p42 = por %p40, %p41
    %p43 = scmp.ne.s32.totalorder %s32, %s33
    %p44 = scmp.eq.s32.totalorder %s24, 0
    %p45 = por %p43, %p44
    %p46 = scmp.ne.s32.totalorder %s32, %s33
    %p47 = scmp.eq.s32.totalorder %s25, 1
    %p48 = por %p46, %p47
    %p50 = scmp.ne.s32.totalorder %s33, %s49
    %p51 = scmp.eq.s32.totalorder %s25, 0
    %p52 = por %p50, %p51
    %s54 = sadd.s32 %s53, 1
    %p57 = scmp.eq.s32.totalorder %s19, 1
    %p58 = scmp.ne.s32.totalorder %s53, %s55
    %p59 = scmp.eq.s32.totalorder %s19, 0
    %p60 = por %p58, %p59
    %p61 = scmp.ne.s32.totalorder %s53, %s55
    %p62 = scmp.eq.s32.totalorder %s24, 1
    %p63 = por %p61, %p62
    %p64 = scmp.ne.s32.totalorder %s55, %s56
    %p65 = scmp.eq.s32.totalorder %s24, 0
    %p66 = por %p64, %p65
    %p67 = scmp.ne.s32.totalorder %s55, %s56
    %p68 = scmp.eq.s32.totalorder %s25, 1
    %p69 = por %p67, %p68
    %p71 = scmp.ne.s32.totalorder %s56, %s70
    %p72 = scmp.eq.s32.totalorder %s25, 0
    %p73 = por %p71, %p72
    %s75 = sadd.s32 %s74, 1
    %p78 = scmp.eq.s32.totalorder %s19, 1
    %p79 = scmp.ne.s32.totalorder %s74, %s76
    %p80 = scmp.eq.s32.totalorder %s19, 0
    %p81 = por %p79, %p80
    %p82 = scmp.ne.s32.totalorder %s74, %s76
    %p83 = scmp.eq.s32.totalorder %s24, 1
    %p84 = por %p82, %p83
    %p85 = scmp.ne.s32.totalorder %s76, %s77
    %p86 = scmp.eq.s32.totalorder %s24, 0
    %p87 = por %p85, %p86
    %p88 = scmp.ne.s32.totalorder %s76, %s77
    %p89 = scmp.eq.s32.totalorder %s25, 1
    %p90 = por %p88, %p89
    %p92 = scmp.ne.s32.totalorder %s77, %s91
    %p93 = scmp.eq.s32.totalorder %s25, 0
    %p94 = por %p92, %p93
    %s96 = sadd.s32 %s95, 1
    %p99 = scmp.eq.s32.totalorder %s19, 1
    %p100 = scmp.ne.s32.totalorder %s95, %s97
    %p101 = scmp.eq.s32.totalorder %s19, 0
    %p102 = por %p100, %p101
    %p103 = scmp.ne.s32.totalorder %s95, %s97
    %p104 = scmp.eq.s32.totalorder %s24, 1
    %p105 = por %p103, %p104
    %p106 = scmp.ne.s32.totalorder %s97, %s98
    %p107 = scmp.eq.s32.totalorder %s24, 0
    %p108 = por %p106, %p107
    %p109 = scmp.ne.s32.totalorder %s97, %s98
    %p110 = scmp.eq.s32.totalorder %s25, 1
    %p111 = por %p109, %p110
    %p113 = scmp.ne.s32.totalorder %s98, %s112
    %p114 = scmp.eq.s32.totalorder %s25, 0
    %p115 = por %p113, %p114
    %s117 = sadd.s32 %s116, 1
    %p120 = scmp.eq.s32.totalorder %s19, 1
    %p121 = scmp.ne.s32.totalorder %s116, %s118
    %p122 = scmp.eq.s32.totalorder %s19, 0
    %p123 = por %p121, %p122
    %p124 = scmp.ne.s32.totalorder %s116, %s118
    %p125 = scmp.eq.s32.totalorder %s24, 1
    %p126 = por %p124, %p125
    %p127 = scmp.ne.s32.totalorder %s118, %s119
    %p128 = scmp.eq.s32.totalorder %s24, 0
    %p129 = por %p127, %p128
    %p130 = scmp.ne.s32.totalorder %s118, %s119
    %p131 = scmp.eq.s32.totalorder %s25, 1
    %p132 = por %p130, %p131
    %p134 = scmp.ne.s32.totalorder %s119, %s133
    %p135 = scmp.eq.s32.totalorder %s25, 0
    %p136 = por %p134, %p135
    %s138 = sadd.s32 %s137, 1
    %p141 = scmp.eq.s32.totalorder %s19, 1
    %p142 = scmp.ne.s32.totalorder %s137, %s139
    %p143 = scmp.eq.s32.totalorder %s19, 0
    %p144 = por %p142, %p143
    %p145 = scmp.ne.s32.totalorder %s137, %s139
    %p146 = scmp.eq.s32.totalorder %s24, 1
    %p147 = por %p145, %p146
    %p148 = scmp.ne.s32.totalorder %s139, %s140
    %p149 = scmp.eq.s32.totalorder %s24, 0
    %p150 = por %p148, %p149
    %p151 = scmp.ne.s32.totalorder %s139, %s140
    %p152 = scmp.eq.s32.totalorder %s25, 1
    %p153 = por %p151, %p152
    %p155 = scmp.ne.s32.totalorder %s140, %s154
    %p156 = scmp.eq.s32.totalorder %s25, 0
    %p157 = por %p155, %p156
    %s159 = sadd.s32 %s158, 1
    %p162 = scmp.eq.s32.totalorder %s19, 1
    %p163 = scmp.ne.s32.totalorder %s158, %s160
    %p164 = scmp.eq.s32.totalorder %s19, 0
    %p165 = por %p163, %p164
    %p166 = scmp.ne.s32.totalorder %s158, %s160
    %p167 = scmp.eq.s32.totalorder %s24, 1
    %p168 = por %p166, %p167
    %p169 = scmp.ne.s32.totalorder %s160, %s161
    %p170 = scmp.eq.s32.totalorder %s24, 0
    %p171 = por %p169, %p170
    %p172 = scmp.ne.s32.totalorder %s160, %s161
    %p173 = scmp.eq.s32.totalorder %s25, 1
    %p174 = por %p172, %p173
    %p176 = scmp.ne.s32.totalorder %s161, %s175
    %p177 = scmp.eq.s32.totalorder %s25, 0
    %p178 = por %p176, %p177
    %s180 = sadd.s32 %s179, 1
    %p183 = scmp.eq.s32.totalorder %s19, 1
    %p184 = scmp.ne.s32.totalorder %s179, %s181
    %p185 = scmp.eq.s32.totalorder %s19, 0
    %p186 = por %p184, %p185
    %p187 = scmp.ne.s32.totalorder %s179, %s181
    %p188 = scmp.eq.s32.totalorder %s24, 1
    %p189 = por %p187, %p188
    %p190 = scmp.ne.s32.totalorder %s181, %s182
    %p191 = scmp.eq.s32.totalorder %s24, 0
    %p192 = por %p190, %p191
    %p193 = scmp.ne.s32.totalorder %s181, %s182
    %p194 = scmp.eq.s32.totalorder %s25, 1
    %p195 = por %p193, %p194
    %p197 = scmp.ne.s32.totalorder %s182, %s196
    %p198 = scmp.eq.s32.totalorder %s25, 0
    %p199 = por %p197, %p198
    %s201 = sadd.s32 %s200, 1
    %p204 = scmp.eq.s32.totalorder %s19, 1
    %p205 = scmp.ne.s32.totalorder %s200, %s202
    %p206 = scmp.eq.s32.totalorder %s19, 0
    %p207 = por %p205, %p206
    %p208 = scmp.ne.s32.totalorder %s200, %s202
    %p209 = scmp.eq.s32.totalorder %s24, 1
    %p210 = por %p208, %p209
    %p211 = scmp.ne.s32.totalorder %s202, %s203
    %p212 = scmp.eq.s32.totalorder %s24, 0
    %p213 = por %p211, %p212
    %p214 = scmp.ne.s32.totalorder %s202, %s203
    %p215 = scmp.eq.s32.totalorder %s25, 1
    %p216 = por %p214, %p215
    %p218 = scmp.ne.s32.totalorder %s203, %s217
    %p219 = scmp.eq.s32.totalorder %s25, 0
    %p220 = por %p218, %p219
    %s222 = sadd.s32 %s221, 1
    %p225 = scmp.eq.s32.totalorder %s19, 1
    %p226 = scmp.ne.s32.totalorder %s221, %s223
    %p227 = scmp.eq.s32.totalorder %s19, 0
    %p228 = por %p226, %p227
    %p229 = scmp.ne.s32.totalorder %s221, %s223
    %p230 = scmp.eq.s32.totalorder %s24, 1
    %p231 = por %p229, %p230
    %p232 = scmp.ne.s32.totalorder %s223, %s224
    %p233 = scmp.eq.s32.totalorder %s24, 0
    %p234 = por %p232, %p233
    %p235 = scmp.ne.s32.totalorder %s223, %s224
    %p236 = scmp.eq.s32.totalorder %s25, 1
    %p237 = por %p235, %p236
    %p239 = scmp.ne.s32.totalorder %s224, %s238
    %p240 = scmp.eq.s32.totalorder %s25, 0
    %p241 = por %p239, %p240
    %s243 = sadd.s32 %s242, 1
    %p246 = scmp.eq.s32.totalorder %s19, 1
    %p247 = scmp.ne.s32.totalorder %s242, %s244
    %p248 = scmp.eq.s32.totalorder %s19, 0
    %p249 = por %p247, %p248
    %p250 = scmp.ne.s32.totalorder %s242, %s244
    %p251 = scmp.eq.s32.totalorder %s24, 1
    %p252 = por %p250, %p251
    %p253 = scmp.ne.s32.totalorder %s244, %s245
    %p254 = scmp.eq.s32.totalorder %s24, 0
    %p255 = por %p253, %p254
    %p256 = scmp.ne.s32.totalorder %s244, %s245
    %p257 = scmp.eq.s32.totalorder %s25, 1
    %p258 = por %p256, %p257
    %p260 = scmp.ne.s32.totalorder %s245, %s259
    %p261 = scmp.eq.s32.totalorder %s25, 0
    %p262 = por %p260, %p261
    %s264 = sadd.s32 %s263, 1
    %p267 = scmp.eq.s32.totalorder %s19, 1
    %p268 = scmp.ne.s32.totalorder %s263, %s265
    %p269 = scmp.eq.s32.totalorder %s19, 0
    %p270 = por %p268, %p269
    %p271 = scmp.ne.s32.totalorder %s263, %s265
    %p272 = scmp.eq.s32.totalorder %s24, 1
    %p273 = por %p271, %p272
    %p274 = scmp.ne.s32.totalorder %s265, %s266
    %p275 = scmp.eq.s32.totalorder %s24, 0
    %p276 = por %p274, %p275
    %p277 = scmp.ne.s32.totalorder %s265, %s266
    %p278 = scmp.eq.s32.totalorder %s25, 1
    %p279 = por %p277, %p278
    %p281 = scmp.ne.s32.totalorder %s266, %s280
    %p282 = scmp.eq.s32.totalorder %s25, 0
    %p283 = por %p281, %p282
    %s285 = sadd.s32 %s284, 1
    %p288 = scmp.eq.s32.totalorder %s19, 1
    %p289 = scmp.ne.s32.totalorder %s284, %s286
    %p290 = scmp.eq.s32.totalorder %s19, 0
    %p291 = por %p289, %p290
    %p292 = scmp.ne.s32.totalorder %s284, %s286
    %p293 = scmp.eq.s32.totalorder %s24, 1
    %p294 = por %p292, %p293
    %p295 = scmp.ne.s32.totalorder %s286, %s287
    %p296 = scmp.eq.s32.totalorder %s24, 0
    %p297 = por %p295, %p296
    %p298 = scmp.ne.s32.totalorder %s286, %s287
    %p299 = scmp.eq.s32.totalorder %s25, 1
    %p300 = por %p298, %p299
    %p302 = scmp.ne.s32.totalorder %s287, %s301
    %p303 = scmp.eq.s32.totalorder %s25, 0
    %p304 = por %p302, %p303
    %s305 = ssub.s32 %s19, %s26
    %p306 = scmp.eq.s32.totalorder %s305, 0
    %s308 = sadd.s32 %s307, 1
    %s309 = scalar_select %p306, %s307, %s308
    %p312 = pneg %p306
    %p313 = scmp.eq.s32.totalorder %s19, 1
    %p314 = por %p312, %p313
    %p315 = scmp.ne.s32.totalorder %s307, %s310
    %p316 = scmp.eq.s32.totalorder %s19, 0
    %p317 = por %p315, %p316
    %p318 = scmp.ne.s32.totalorder %s307, %s310
    %p319 = scmp.eq.s32.totalorder %s24, 1
    %p320 = por %p318, %p319
    %p321 = scmp.ne.s32.totalorder %s310, %s311
    %p322 = scmp.eq.s32.totalorder %s24, 0
    %p323 = por %p321, %p322
    %p324 = scmp.ne.s32.totalorder %s310, %s311
    %p325 = scmp.eq.s32.totalorder %s25, 1
    %p326 = por %p324, %p325
    %p328 = scmp.ne.s32.totalorder %s311, %s327
    %p329 = scmp.eq.s32.totalorder %s25, 0
    %p330 = por %p328, %p329
    %p331 = scmp.le.s32.totalorder 1, %s19
    %p332 = scmp.lt.s32.totalorder %s19, 3
    %p333 = pnand %p331, %p332
    %p334 = pneg %p333
    // Predicated region
    $region9: #{nonsymmetric_id_fcn.1} parent=5 // pred_check
      _
    $region10: #{nonsymmetric_id_fcn.1} parent=5 // pred_check_branch
      %336 = sbr.rel (%p333) target = $region12
    $region11: #{nonsymmetric_id_fcn.1} parent=5 // pred_region
      %s337 = ssub.s32 %s19, 1
      // Predicated region
      $region13: #{nonsymmetric_id_fcn.1} parent=11 // pred_check
        %p338 = pneg %p66
      $region14: #{nonsymmetric_id_fcn.1} parent=11 // pred_check_branch
        %340 = sbr.rel (%p338) target = $region16
      $region15: #{nonsymmetric_id_fcn.1} parent=11 // pred_region
        _
      $region16: #{nonsymmetric_id_fcn.1} parent=11 // pred_fallthru
        _
      // Predicated region
      $region17: #{nonsymmetric_id_fcn.1} parent=11 // pred_check
        %p341 = pneg %p87
      $region18: #{nonsymmetric_id_fcn.1} parent=11 // pred_check_branch
        %343 = sbr.rel (%p341) target = $region20
      $region19: #{nonsymmetric_id_fcn.1} parent=11 // pred_region
        _
      $region20: #{nonsymmetric_id_fcn.1} parent=11 // pred_fallthru
        _
      // Predicated region
      $region21: #{nonsymmetric_id_fcn.1} parent=11 // pred_check
        %p344 = pneg %p108
      $region22: #{nonsymmetric_id_fcn.1} parent=11 // pred_check_branch
        %346 = sbr.rel (%p344) target = $region24
      $region23: #{nonsymmetric_id_fcn.1} parent=11 // pred_region
        _
      $region24: #{nonsymmetric_id_fcn.1} parent=11 // pred_fallthru
        _
      // Predicated region
      $region25: #{nonsymmetric_id_fcn.1} parent=11 // pred_check
        %p347 = pneg %p129
      $region26: #{nonsymmetric_id_fcn.1} parent=11 // pred_check_branch
        %349 = sbr.rel (%p347) target = $region28
      $region27: #{nonsymmetric_id_fcn.1} parent=11 // pred_region
        _
      $region28: #{nonsymmetric_id_fcn.1} parent=11 // pred_fallthru
        _
      // Predicated region
      $region29: #{nonsymmetric_id_fcn.1} parent=11 // pred_check
        %p350 = pneg %p150
      $region30: #{nonsymmetric_id_fcn.1} parent=11 // pred_check_branch
        %352 = sbr.rel (%p350) target = $region32
      $region31: #{nonsymmetric_id_fcn.1} parent=11 // pred_region
        _
      $region32: #{nonsymmetric_id_fcn.1} parent=11 // pred_fallthru
        _
      // Predicated region
      $region33: #{nonsymmetric_id_fcn.1} parent=11 // pred_check
        %p353 = pneg %p171
      $region34: #{nonsymmetric_id_fcn.1} parent=11 // pred_check_branch
        %355 = sbr.rel (%p353) target = $region36
      $region35: #{nonsymmetric_id_fcn.1} parent=11 // pred_region
        _
      $region36: #{nonsymmetric_id_fcn.1} parent=11 // pred_fallthru
        _
      // Predicated region
      $region37: #{nonsymmetric_id_fcn.1} parent=11 // pred_check
        %p356 = pneg %p192
      $region38: #{nonsymmetric_id_fcn.1} parent=11 // pred_check_branch
        %358 = sbr.rel (%p356) target = $region40
      $region39: #{nonsymmetric_id_fcn.1} parent=11 // pred_region
        _
      $region40: #{nonsymmetric_id_fcn.1} parent=11 // pred_fallthru
        _
      // Predicated region
      $region41: #{nonsymmetric_id_fcn.1} parent=11 // pred_check
        %p359 = pneg %p213
      $region42: #{nonsymmetric_id_fcn.1} parent=11 // pred_check_branch
        %361 = sbr.rel (%p359) target = $region44
      $region43: #{nonsymmetric_id_fcn.1} parent=11 // pred_region
        _
      $region44: #{nonsymmetric_id_fcn.1} parent=11 // pred_fallthru
        _
      // Predicated region
      $region45: #{nonsymmetric_id_fcn.1} parent=11 // pred_check
        %p362 = pneg %p234
      $region46: #{nonsymmetric_id_fcn.1} parent=11 // pred_check_branch
        %364 = sbr.rel (%p362) target = $region48
      $region47: #{nonsymmetric_id_fcn.1} parent=11 // pred_region
        _
      $region48: #{nonsymmetric_id_fcn.1} parent=11 // pred_fallthru
        _
      // Predicated region
      $region49: #{nonsymmetric_id_fcn.1} parent=11 // pred_check
        %p365 = pneg %p255
      $region50: #{nonsymmetric_id_fcn.1} parent=11 // pred_check_branch
        %367 = sbr.rel (%p365) target = $region52
      $region51: #{nonsymmetric_id_fcn.1} parent=11 // pred_region
        _
      $region52: #{nonsymmetric_id_fcn.1} parent=11 // pred_fallthru
        _
      // Predicated region
      $region53: #{nonsymmetric_id_fcn.1} parent=11 // pred_check
        %p368 = pneg %p276
      $region54: #{nonsymmetric_id_fcn.1} parent=11 // pred_check_branch
        %370 = sbr.rel (%p368) target = $region56
      $region55: #{nonsymmetric_id_fcn.1} parent=11 // pred_region
        _
      $region56: #{nonsymmetric_id_fcn.1} parent=11 // pred_fallthru
        _
      // Predicated region
      $region57: #{nonsymmetric_id_fcn.1} parent=11 // pred_check
        %p371 = pneg %p297
      $region58: #{nonsymmetric_id_fcn.1} parent=11 // pred_check_branch
        %373 = sbr.rel (%p371) target = $region60
      $region59: #{nonsymmetric_id_fcn.1} parent=11 // pred_region
        _
      $region60: #{nonsymmetric_id_fcn.1} parent=11 // pred_fallthru
        _
    $region12: #{nonsymmetric_id_fcn.1} parent=5 // pred_fallthru
      _
    %p374 = scmp.lt.s32.totalorder %s19, 2
    // Predicated region
    $region61: #{nonsymmetric_id_fcn.1} parent=5 // pred_check
      %p375 = pneg %p374
    $region62: #{nonsymmetric_id_fcn.1} parent=5 // pred_check_branch
      %377 = sbr.rel (%p375) target = $region64
    $region63: #{nonsymmetric_id_fcn.1} parent=5 // pred_region
      // Predicated region
      $region65: #{nonsymmetric_id_fcn.1} parent=63 // pred_check
        %p378 = pneg %p39
      $region66: #{nonsymmetric_id_fcn.1} parent=63 // pred_check_branch
        %380 = sbr.rel (%p378) target = $region68
      $region67: #{nonsymmetric_id_fcn.1} parent=63 // pred_region
        %s381 = smul.u32 4, %s19
        %p382 = scmp.lt.s32.totalorder %s381, 7
        %s383 = scalar_select %p382, %s381, 7
        %s384 = smul.addr %s383, 8
        %s385 = scalar_lea.vmem %s0, %s384
        %s386 = smul.u32 4, %s19
      $region68: #{nonsymmetric_id_fcn.1} parent=63 // pred_fallthru
        _
    $region64: #{nonsymmetric_id_fcn.1} parent=5 // pred_fallthru
      _
    %p387 = scmp.le.s32.totalorder 1, %s19
    %p388 = scmp.lt.s32.totalorder %s19, 3
    %p389 = pnand %p387, %p388
    %p390 = pneg %p389
    // Predicated region
    $region69: #{nonsymmetric_id_fcn.1} parent=5 // pred_check
      _
    $region70: #{nonsymmetric_id_fcn.1} parent=5 // pred_check_branch
      %392 = sbr.rel (%p389) target = $region72
    $region71: #{nonsymmetric_id_fcn.1} parent=5 // pred_region
      %s393 = ssub.s32 %s19, 1
      %s394 = smul.u32 4, %s24
      %p395 = scmp.lt.s32.totalorder %s394, 7
      %s396 = scalar_select %p395, %s394, 7
      %s397 = smul.addr %s396, 8
      %s398 = scalar_lea.vmem %s0, %s397
      %p399 = pneg %p45
      %p400 = pneg %p42
      %p401 = pneg %p66
      %p402 = pneg %p63
      %p403 = pneg %p87
      %p404 = pneg %p84
      %p405 = pneg %p108
      %p406 = pneg %p105
      %p407 = pneg %p129
      %p408 = pneg %p126
      %p409 = pneg %p150
      %p410 = pneg %p147
      %p411 = pneg %p171
      %p412 = pneg %p168
      %p413 = pneg %p192
      %p414 = pneg %p189
      %p415 = pneg %p213
      %p416 = pneg %p210
      %p417 = pneg %p234
      %p418 = pneg %p231
      %p419 = pneg %p255
      %p420 = pneg %p252
      %p421 = pneg %p276
      %p422 = pneg %p273
      %p423 = pneg %p297
      %p424 = pneg %p294
      %p425 = pneg %p323
      %p426 = pneg %p320
      %s427 = smul.u32 4, %s24
      %p428 = scmp.lt.s32.totalorder %s427, 7
      %s429 = scalar_select %p428, %s427, 7
      %s430 = smul.addr %s429, 8
      %s431 = scalar_lea.vmem %s13, %s430
      %s432 = smul.u32 4, %s24
      %p433 = scmp.lt.s32.totalorder %s432, 7
      %s434 = scalar_select %p433, %s432, 7
      %s435 = smul.addr %s434, 8
      %s436 = scalar_lea.vmem %s0, %s435
      %s437 = smul.u32 4, %s24
      %s438 = smul.u32 4, %s24
      %p439 = scmp.lt.s32.totalorder %s438, 7
      %s440 = scalar_select %p439, %s438, 7
      %s441 = smul.addr %s440, 8
      %s442 = scalar_lea.vmem %s13, %s441
      %s443 = smul.u32 4, %s24
      %v444 = vld [vmem:[%s436] sm:$0xff]
      %v445 = vld [vmem:[%s436 + $0x8] sm:$0xff]
      %v446 = vld [vmem:[%s436 + $0x10] sm:$0xff]
      %v447 = vld [vmem:[%s436 + $0x18] sm:$0xff]
      %v448 = vld [vmem:[%s1] sm:$0xff]
      %v449 = vld [vmem:[%s1 + $0x8] sm:$0xff]
      %v450 = vld [vmem:[%s1 + $0x10] sm:$0xff]
      %v451 = vld [vmem:[%s1 + $0x18] sm:$0xff]
      %v452 = vld [vmem:[%s1 + $0x20] sm:$0xff]
      %v453 = vld [vmem:[%s1 + $0x28] sm:$0xff]
      %v454 = vld [vmem:[%s1 + $0x30] sm:$0xff]
      %v455 = vld [vmem:[%s1 + $0x38] sm:$0xff]
      %v456 = vld [vmem:[%s7] sm:$0x1]
      %v458 = vperm.slane %v456, 0
      %vm460 = vcmask 523264
      %v462 = vsel %vm460, %v444, 0
      %v465 = vsel %vm460, %v445, 0
      %v468 = vsel %vm460, %v446, 0
      %v471 = vsel %vm460, %v447, 0
      %473 = vmatpush.msra.mxu0 0.0
      %474 = vmatpush.msra.mxu0 0.0
      %475 = vmatpush.msra.mxu0 0.0
      %476 = vmatpush.msra.mxu0 0.0
      %477 = vmatpush.msra.mxu0 0.0
      %478 = vmatpush.msra.mxu0 0.0
      %479 = vmatpush.msra.mxu0 0.0
      %480 = vmatpush.msra.mxu0 0.0
      %481 = vmatpush.msra.mxu0 %v455
      %482 = vmatpush.msra.mxu0 %v454
      %483 = vmatpush.msra.mxu0 %v453
      %484 = vmatpush.msra.mxu0 %v452
      %485 = vmatpush.msra.mxu0 %v451
      %486 = vmatpush.msra.mxu0 %v450
      %487 = vmatpush.msra.mxu0 %v449
      %488 = vmatpush.msra.mxu0 %v448
      %489 = vmatmul.f32.gmra.mxu0 %v462
      %v490 = vpop.f32.mrf.mxu0
      %v491 = vadd.f32 %v458, %v490
      %492 = vmatmul.f32.gmra.mxu0 %v465
      %v493 = vpop.f32.mrf.mxu0
      %v494 = vadd.f32 %v458, %v493
      %495 = vmatmul.f32.gmra.mxu0 %v468
      %v496 = vpop.f32.mrf.mxu0
      %v497 = vadd.f32 %v458, %v496
      %498 = vmatmul.f32.gmra.mxu0 %v471
      %v499 = vpop.f32.mrf.mxu0
      %v500 = vadd.f32 %v458, %v499
      %501 = vdwg.mxu0
      %v502 = vmax.f32 %v491, 0.0
      %v503 = vmax.f32 %v494, 0.0
      %v504 = vmax.f32 %v497, 0.0
      %v505 = vmax.f32 %v500, 0.0
      %v506 = vld [vmem:[%s2] sm:$0xff]
      %v507 = vld [vmem:[%s2 + $0x8] sm:$0xff]
      %v508 = vld [vmem:[%s2 + $0x10] sm:$0xff]
      %v509 = vld [vmem:[%s2 + $0x18] sm:$0xff]
      %v510 = vld [vmem:[%s2 + $0x20] sm:$0xff]
      %v511 = vld [vmem:[%s2 + $0x28] sm:$0xff]
      %v512 = vld [vmem:[%s2 + $0x30] sm:$0xff]
      %v513 = vld [vmem:[%s2 + $0x38] sm:$0xff]
      %v514 = vld [vmem:[%s2 + $0x40] sm:$0xff]
      %v515 = vld [vmem:[%s2 + $0x48] sm:$0xff]
      %v516 = vld [vmem:[%s2 + $0x50] sm:$0xff]
      %v517 = vld [vmem:[%s2 + $0x58] sm:$0xff]
      %v518 = vld [vmem:[%s2 + $0x60] sm:$0xff]
      %v519 = vld [vmem:[%s2 + $0x68] sm:$0xff]
      %v520 = vld [vmem:[%s2 + $0x70] sm:$0xff]
      %v521 = vld [vmem:[%s2 + $0x78] sm:$0xff]
      %v522 = vld [vmem:[%s8] sm:$0x1]
      %v524 = vperm.slane %v522, 0
      %526 = vmatpush.msra.mxu0 %v521
      %527 = vmatpush.msra.mxu0 %v520
      %528 = vmatpush.msra.mxu0 %v519
      %529 = vmatpush.msra.mxu0 %v518
      %530 = vmatpush.msra.mxu0 %v517
      %531 = vmatpush.msra.mxu0 %v516
      %532 = vmatpush.msra.mxu0 %v515
      %533 = vmatpush.msra.mxu0 %v514
      %534 = vmatpush.msra.mxu0 %v513
      %535 = vmatpush.msra.mxu0 %v512
      %536 = vmatpush.msra.mxu0 %v511
      %537 = vmatpush.msra.mxu0 %v510
      %538 = vmatpush.msra.mxu0 %v509
      %539 = vmatpush.msra.mxu0 %v508
      %540 = vmatpush.msra.mxu0 %v507
      %541 = vmatpush.msra.mxu0 %v506
      %542 = vmatmul.f32.gmra.mxu0 %v502
      %v543 = vpop.f32.mrf.mxu0
      %v544 = vadd.f32 %v524, %v543
      %545 = vmatmul.f32.gmra.mxu0 %v503
      %v546 = vpop.f32.mrf.mxu0
      %v547 = vadd.f32 %v524, %v546
      %548 = vmatmul.f32.gmra.mxu0 %v504
      %v549 = vpop.f32.mrf.mxu0
      %v550 = vadd.f32 %v524, %v549
      %551 = vmatmul.f32.gmra.mxu0 %v505
      %v552 = vpop.f32.mrf.mxu0
      %v553 = vadd.f32 %v524, %v552
      %554 = vdwg.mxu0
      %v555 = vmax.f32 %v544, 0.0
      %v556 = vmax.f32 %v547, 0.0
      %v557 = vmax.f32 %v550, 0.0
      %v558 = vmax.f32 %v553, 0.0
      %v559 = vld [vmem:[%s3] sm:$0xff]
      %v560 = vld [vmem:[%s3 + $0x8] sm:$0xff]
      %v561 = vld [vmem:[%s3 + $0x10] sm:$0xff]
      %v562 = vld [vmem:[%s3 + $0x18] sm:$0xff]
      %v563 = vld [vmem:[%s3 + $0x20] sm:$0xff]
      %v564 = vld [vmem:[%s3 + $0x28] sm:$0xff]
      %v565 = vld [vmem:[%s3 + $0x30] sm:$0xff]
      %v566 = vld [vmem:[%s3 + $0x38] sm:$0xff]
      %v567 = vld [vmem:[%s3 + $0x40] sm:$0xff]
      %v568 = vld [vmem:[%s3 + $0x48] sm:$0xff]
      %v569 = vld [vmem:[%s3 + $0x50] sm:$0xff]
      %v570 = vld [vmem:[%s3 + $0x58] sm:$0xff]
      %v571 = vld [vmem:[%s3 + $0x60] sm:$0xff]
      %v572 = vld [vmem:[%s3 + $0x68] sm:$0xff]
      %v573 = vld [vmem:[%s3 + $0x70] sm:$0xff]
      %v574 = vld [vmem:[%s3 + $0x78] sm:$0xff]
      %v575 = vld [vmem:[%s9] sm:$0x1]
      %v577 = vperm.slane %v575, 0
      %579 = vmatpush.msra.mxu0 %v574
      %580 = vmatpush.msra.mxu0 %v573
      %581 = vmatpush.msra.mxu0 %v572
      %582 = vmatpush.msra.mxu0 %v571
      %583 = vmatpush.msra.mxu0 %v570
      %584 = vmatpush.msra.mxu0 %v569
      %585 = vmatpush.msra.mxu0 %v568
      %586 = vmatpush.msra.mxu0 %v567
      %587 = vmatpush.msra.mxu0 %v566
      %588 = vmatpush.msra.mxu0 %v565
      %589 = vmatpush.msra.mxu0 %v564
      %590 = vmatpush.msra.mxu0 %v563
      %591 = vmatpush.msra.mxu0 %v562
      %592 = vmatpush.msra.mxu0 %v561
      %593 = vmatpush.msra.mxu0 %v560
      %594 = vmatpush.msra.mxu0 %v559
      %595 = vmatmul.f32.gmra.mxu0 %v555
      %v596 = vpop.f32.mrf.mxu0
      %v597 = vadd.f32 %v577, %v596
      %598 = vmatmul.f32.gmra.mxu0 %v556
      %v599 = vpop.f32.mrf.mxu0
      %v600 = vadd.f32 %v577, %v599
      %601 = vmatmul.f32.gmra.mxu0 %v557
      %v602 = vpop.f32.mrf.mxu0
      %v603 = vadd.f32 %v577, %v602
      %604 = vmatmul.f32.gmra.mxu0 %v558
      %v605 = vpop.f32.mrf.mxu0
      %v606 = vadd.f32 %v577, %v605
      %607 = vdwg.mxu0
      %v608 = vmax.f32 %v597, 0.0
      %v609 = vmax.f32 %v600, 0.0
      %v610 = vmax.f32 %v603, 0.0
      %v611 = vmax.f32 %v606, 0.0
      %v612 = vld [vmem:[%s4] sm:$0xff]
      %v613 = vld [vmem:[%s4 + $0x8] sm:$0xff]
      %v614 = vld [vmem:[%s4 + $0x10] sm:$0xff]
      %v615 = vld [vmem:[%s4 + $0x18] sm:$0xff]
      %v616 = vld [vmem:[%s4 + $0x20] sm:$0xff]
      %v617 = vld [vmem:[%s4 + $0x28] sm:$0xff]
      %v618 = vld [vmem:[%s4 + $0x30] sm:$0xff]
      %v619 = vld [vmem:[%s4 + $0x38] sm:$0xff]
      %v620 = vld [vmem:[%s4 + $0x40] sm:$0xff]
      %v621 = vld [vmem:[%s4 + $0x48] sm:$0xff]
      %v622 = vld [vmem:[%s4 + $0x50] sm:$0xff]
      %v623 = vld [vmem:[%s4 + $0x58] sm:$0xff]
      %v624 = vld [vmem:[%s4 + $0x60] sm:$0xff]
      %v625 = vld [vmem:[%s4 + $0x68] sm:$0xff]
      %v626 = vld [vmem:[%s4 + $0x70] sm:$0xff]
      %v627 = vld [vmem:[%s4 + $0x78] sm:$0xff]
      %v628 = vld [vmem:[%s10] sm:$0x1]
      %v630 = vperm.slane %v628, 0
      %632 = vmatpush.msra.mxu0 %v627
      %633 = vmatpush.msra.mxu0 %v626
      %634 = vmatpush.msra.mxu0 %v625
      %635 = vmatpush.msra.mxu0 %v624
      %636 = vmatpush.msra.mxu0 %v623
      %637 = vmatpush.msra.mxu0 %v622
      %638 = vmatpush.msra.mxu0 %v621
      %639 = vmatpush.msra.mxu0 %v620
      %640 = vmatpush.msra.mxu0 %v619
      %641 = vmatpush.msra.mxu0 %v618
      %642 = vmatpush.msra.mxu0 %v617
      %643 = vmatpush.msra.mxu0 %v616
      %644 = vmatpush.msra.mxu0 %v615
      %645 = vmatpush.msra.mxu0 %v614
      %646 = vmatpush.msra.mxu0 %v613
      %647 = vmatpush.msra.mxu0 %v612
      %648 = vmatmul.f32.gmra.mxu0 %v608
      %v649 = vpop.f32.mrf.mxu0
      %v650 = vadd.f32 %v630, %v649
      %651 = vmatmul.f32.gmra.mxu0 %v609
      %v652 = vpop.f32.mrf.mxu0
      %v653 = vadd.f32 %v630, %v652
      %654 = vmatmul.f32.gmra.mxu0 %v610
      %v655 = vpop.f32.mrf.mxu0
      %v656 = vadd.f32 %v630, %v655
      %657 = vmatmul.f32.gmra.mxu0 %v611
      %v658 = vpop.f32.mrf.mxu0
      %v659 = vadd.f32 %v630, %v658
      %660 = vdwg.mxu0
      %v661 = vmax.f32 %v650, 0.0
      %v662 = vmax.f32 %v653, 0.0
      %v663 = vmax.f32 %v656, 0.0
      %v664 = vmax.f32 %v659, 0.0
      %v665 = vld [vmem:[%s5] sm:$0xff]
      %v666 = vld [vmem:[%s5 + $0x8] sm:$0xff]
      %v667 = vld [vmem:[%s5 + $0x10] sm:$0xff]
      %v668 = vld [vmem:[%s5 + $0x18] sm:$0xff]
      %v669 = vld [vmem:[%s5 + $0x20] sm:$0xff]
      %v670 = vld [vmem:[%s5 + $0x28] sm:$0xff]
      %v671 = vld [vmem:[%s5 + $0x30] sm:$0xff]
      %v672 = vld [vmem:[%s5 + $0x38] sm:$0xff]
      %v673 = vld [vmem:[%s5 + $0x40] sm:$0xff]
      %v674 = vld [vmem:[%s5 + $0x48] sm:$0xff]
      %v675 = vld [vmem:[%s5 + $0x50] sm:$0xff]
      %v676 = vld [vmem:[%s5 + $0x58] sm:$0xff]
      %v677 = vld [vmem:[%s5 + $0x60] sm:$0xff]
      %v678 = vld [vmem:[%s5 + $0x68] sm:$0xff]
      %v679 = vld [vmem:[%s5 + $0x70] sm:$0xff]
      %v680 = vld [vmem:[%s5 + $0x78] sm:$0xff]
      %v681 = vld [vmem:[%s11] sm:$0x1]
      %v683 = vperm.slane %v681, 0
      %685 = vmatpush.msra.mxu0 %v680
      %686 = vmatpush.msra.mxu0 %v679
      %687 = vmatpush.msra.mxu0 %v678
      %688 = vmatpush.msra.mxu0 %v677
      %689 = vmatpush.msra.mxu0 %v676
      %690 = vmatpush.msra.mxu0 %v675
      %691 = vmatpush.msra.mxu0 %v674
      %692 = vmatpush.msra.mxu0 %v673
      %693 = vmatpush.msra.mxu0 %v672
      %694 = vmatpush.msra.mxu0 %v671
      %695 = vmatpush.msra.mxu0 %v670
      %696 = vmatpush.msra.mxu0 %v669
      %697 = vmatpush.msra.mxu0 %v668
      %698 = vmatpush.msra.mxu0 %v667
      %699 = vmatpush.msra.mxu0 %v666
      %700 = vmatpush.msra.mxu0 %v665
      %701 = vmatmul.f32.gmra.mxu0 %v661
      %v702 = vpop.f32.mrf.mxu0
      %v703 = vadd.f32 %v683, %v702
      %704 = vmatmul.f32.gmra.mxu0 %v662
      %v705 = vpop.f32.mrf.mxu0
      %v706 = vadd.f32 %v683, %v705
      %707 = vmatmul.f32.gmra.mxu0 %v663
      %v708 = vpop.f32.mrf.mxu0
      %v709 = vadd.f32 %v683, %v708
      %710 = vmatmul.f32.gmra.mxu0 %v664
      %v711 = vpop.f32.mrf.mxu0
      %v712 = vadd.f32 %v683, %v711
      %713 = vdwg.mxu0
      %v714 = vmax.f32 %v703, 0.0
      %v715 = vmax.f32 %v706, 0.0
      %v716 = vmax.f32 %v709, 0.0
      %v717 = vmax.f32 %v712, 0.0
      %v718 = vld [vmem:[%s6] sm:$0xff]
      %v719 = vld [vmem:[%s6 + $0x8] sm:$0xff]
      %v720 = vld [vmem:[%s6 + $0x10] sm:$0xff]
      %v721 = vld [vmem:[%s6 + $0x18] sm:$0xff]
      %v722 = vld [vmem:[%s6 + $0x20] sm:$0xff]
      %v723 = vld [vmem:[%s6 + $0x28] sm:$0xff]
      %v724 = vld [vmem:[%s6 + $0x30] sm:$0xff]
      %v725 = vld [vmem:[%s6 + $0x38] sm:$0xff]
      %v726 = vld [vmem:[%s6 + $0x40] sm:$0xff]
      %v727 = vld [vmem:[%s6 + $0x48] sm:$0xff]
      %v728 = vld [vmem:[%s6 + $0x50] sm:$0xff]
      %v729 = vld [vmem:[%s6 + $0x58] sm:$0xff]
      %v730 = vld [vmem:[%s6 + $0x60] sm:$0xff]
      %v731 = vld [vmem:[%s6 + $0x68] sm:$0xff]
      %v732 = vld [vmem:[%s6 + $0x70] sm:$0xff]
      %v733 = vld [vmem:[%s6 + $0x78] sm:$0xff]
      %v734 = vld [vmem:[%s12] sm:$0x1]
      %v736 = vperm.slane %v734, 0
      %738 = vmatpush.msra.mxu0 %v733
      %739 = vmatpush.msra.mxu0 %v732
      %740 = vmatpush.msra.mxu0 %v731
      %741 = vmatpush.msra.mxu0 %v730
      %742 = vmatpush.msra.mxu0 %v729
      %743 = vmatpush.msra.mxu0 %v728
      %744 = vmatpush.msra.mxu0 %v727
      %745 = vmatpush.msra.mxu0 %v726
      %746 = vmatpush.msra.mxu0 %v725
      %747 = vmatpush.msra.mxu0 %v724
      %748 = vmatpush.msra.mxu0 %v723
      %749 = vmatpush.msra.mxu0 %v722
      %750 = vmatpush.msra.mxu0 %v721
      %751 = vmatpush.msra.mxu0 %v720
      %752 = vmatpush.msra.mxu0 %v719
      %753 = vmatpush.msra.mxu0 %v718
      %754 = vmatmul.f32.gmra.mxu0 %v714
      %v755 = vpop.f32.mrf.mxu0
      %v756 = vadd.f32 %v736, %v755
      %757 = vmatmul.f32.gmra.mxu0 %v715
      %v758 = vpop.f32.mrf.mxu0
      %v759 = vadd.f32 %v736, %v758
      %760 = vmatmul.f32.gmra.mxu0 %v716
      %v761 = vpop.f32.mrf.mxu0
      %v762 = vadd.f32 %v736, %v761
      %763 = vmatmul.f32.gmra.mxu0 %v717
      %v764 = vpop.f32.mrf.mxu0
      %v765 = vadd.f32 %v736, %v764
      %766 = vdwg.mxu0
      %v767 = vand.u32 2147483647, %v756
      %v768 = vand.u32 2147483647, %v759
      %v769 = vand.u32 2147483647, %v762
      %v770 = vand.u32 2147483647, %v765
      %vm771 = vcmp.lt.f32.partialorder %v767, 1e-05
      %vm772 = vcmp.lt.f32.partialorder %v768, 1e-05
      %vm773 = vcmp.lt.f32.partialorder %v769, 1e-05
      %vm774 = vcmp.lt.f32.partialorder %v770, 1e-05
      %v775 = vsel %vm771, 0.0, %v756
      %v776 = vsel %vm772, 0.0, %v759
      %v777 = vsel %vm773, 0.0, %v762
      %v778 = vsel %vm774, 0.0, %v765
      %779 = vst.msk [vmem:[%s442] sm:$0xff] %vm460, %v775
      %780 = vst.msk [vmem:[%s442 + $0x8] sm:$0xff] %vm460, %v776
      %781 = vst.msk [vmem:[%s442 + $0x10] sm:$0xff] %vm460, %v777
      %782 = vst.msk [vmem:[%s442 + $0x18] sm:$0xff] %vm460, %v778
      %s783 = smul.u32 4, %s24
      %p784 = scmp.lt.s32.totalorder %s783, 7
      %s785 = scalar_select %p784, %s783, 7
      %s786 = smul.addr %s785, 8
      %s787 = scalar_lea.vmem %s13, %s786
      // Predicated region
      $region73: #{nonsymmetric_id_fcn.1} parent=71 // pred_check
        %p788 = pneg %p320
      $region74: #{nonsymmetric_id_fcn.1} parent=71 // pred_check_branch
        %790 = sbr.rel (%p788) target = $region76
      $region75: #{nonsymmetric_id_fcn.1} parent=71 // pred_region
        %s791 = smul.u32 4, %s24
      $region76: #{nonsymmetric_id_fcn.1} parent=71 // pred_fallthru
        _
    $region72: #{nonsymmetric_id_fcn.1} parent=5 // pred_fallthru
      _
    %p792 = scmp.le.s32.totalorder 2, %s19
    // Predicated region
    $region77: #{nonsymmetric_id_fcn.1} parent=5 // pred_check
      %p793 = pneg %p792
    $region78: #{nonsymmetric_id_fcn.1} parent=5 // pred_check_branch
      %795 = sbr.rel (%p793) target = $region80
    $region79: #{nonsymmetric_id_fcn.1} parent=5 // pred_region
      %s796 = ssub.s32 %s19, 2
      // Predicated region
      $region81: #{nonsymmetric_id_fcn.1} parent=79 // pred_check
        %p797 = pneg %p326
      $region82: #{nonsymmetric_id_fcn.1} parent=79 // pred_check_branch
        %799 = sbr.rel (%p797) target = $region84
      $region83: #{nonsymmetric_id_fcn.1} parent=79 // pred_region
        %s800 = smul.u32 4, %s25
        %p801 = scmp.lt.s32.totalorder %s800, 7
        %s802 = scalar_select %p801, %s800, 7
        %s803 = smul.addr %s802, 8
        %s804 = scalar_lea.vmem %s13, %s803
      $region84: #{nonsymmetric_id_fcn.1} parent=79 // pred_fallthru
        _
    $region80: #{nonsymmetric_id_fcn.1} parent=5 // pred_fallthru
      _
  $region6: #{nonsymmetric_id_fcn.1} parent=0 // loop_footer
    %s23 = sadd.s32 1, %s19
  $region7: #{nonsymmetric_id_fcn.1} parent=0 // loop_footer_branch
    %18 = sbr.rel target = $region3
  $region8: #{nonsymmetric_id_fcn.1} parent=0 // loop_exit
    _

</llo_original>
